<compile_context>
chip_gen: v6e
topology: v6e:2x2x1
jax: 0.10.0
libtpu: 0.0.40
codegen_flags: <defaults>
</compile_context>

<pallas_src>
import jax
import jax.numpy as jnp
from jax import lax
from jax.experimental import pallas as pl
from jax.experimental.pallas import tpu as pltpu


def _round_up(x, m):
    return ((x + m - 1) // m) * m


def _make_encoder_kernel(n_linear, ln_eps):
    """Builds a fused (Linear->ReLU)*(n-1) -> Linear -> LayerNorm kernel body."""

    def kernel(*refs):
        # refs = (x, w0, b0, ..., w_{n-1}, b_{n-1}, gamma, beta, out)
        x_ref = refs[0]
        gamma_ref = refs[1 + 2 * n_linear]
        beta_ref = refs[2 + 2 * n_linear]
        out_ref = refs[-1]

        h = x_ref[...]
        for li in range(n_linear):
            w_ref = refs[1 + 2 * li]
            b_ref = refs[2 + 2 * li]
            # MXU matmul in the (possibly bf16) streaming dtype, f32 accumulation.
            h = jnp.dot(h.astype(w_ref.dtype), w_ref[...],
                        preferred_element_type=jnp.float32)
            h = h + b_ref[...]                     # f32 bias add (VPU)
            if li < n_linear - 1:
                h = jnp.maximum(h, 0.0)            # ReLU (last layer: Identity)

        # ---- LayerNorm over the feature (lane) axis, all in f32 ----
        # Reductions ride the XLU, rsqrt rides the EUP -> off the VPU/store
        # critical slots; 1/F folds into a constant multiply via jnp.mean.
        mean = jnp.mean(h, axis=-1, keepdims=True)
        centered = h - mean
        var = jnp.mean(centered * centered, axis=-1, keepdims=True)
        normed = centered * lax.rsqrt(var + ln_eps)
        out_ref[...] = (normed * gamma_ref[...] + beta_ref[...]).astype(out_ref.dtype)

    return kernel


def encoder_forward(x, params, *, row_tile=512, compute_dtype=jnp.float32,
                    vmem_limit_bytes=None, ln_eps=1e-5):
    """x: [N, input_features] -> [N, output_features] float32.

    params: flat tuple (w0, b0, ..., w_{L-1}, b_{L-1}, gamma, beta) with
            w_i: [fan_in, fan_out], b_i / gamma / beta: [1, fan_out].
    """
    n_linear = (len(params) - 2) // 2
    ws = [params[2 * i] for i in range(n_linear)]
    bs = [params[2 * i + 1] for i in range(n_linear)]
    gamma, beta = params[-2], params[-1]

    N, in_f = x.shape
    out_f = ws[-1].shape[1]

    # Row tile: as large as practical (amortizes per-step overhead), but no
    # larger than the (8-aligned) problem so tiny inputs aren't blown up.
    tn = min(int(row_tile), _round_up(max(N, 1), 8))
    tn = _round_up(tn, 8)
    n_pad = _round_up(max(N, 1), tn)

    # Stream x and weights in the compute dtype (bf16 halves HBM traffic for
    # the dominant streams); keep biases / LN params in f32 so elementwise +
    # LayerNorm math stays f32.
    xp = x.astype(compute_dtype)
    if n_pad != N:
        xp = jnp.pad(xp, ((0, n_pad - N), (0, 0)))
    ws = [w.astype(compute_dtype) for w in ws]
    bs = [b.astype(jnp.float32) for b in bs]
    gamma = gamma.astype(jnp.float32)
    beta = beta.astype(jnp.float32)

    def resident(shape):
        # Same block index at every grid step -> fetched to VMEM once, reused.
        return pl.BlockSpec(shape, lambda i: (0, 0))

    in_specs = [pl.BlockSpec((tn, in_f), lambda i: (i, 0))]
    operands = [xp]
    for w, b in zip(ws, bs):
        in_specs += [resident(w.shape), resident(b.shape)]
        operands += [w, b]
    in_specs += [resident(gamma.shape), resident(beta.shape)]
    operands += [gamma, beta]

    kernel = _make_encoder_kernel(n_linear, ln_eps)

    out = pl.pallas_call(
        kernel,
        out_shape=jax.ShapeDtypeStruct((n_pad, out_f), jnp.float32),
        grid=(n_pad // tn,),
        in_specs=in_specs,
        out_specs=pl.BlockSpec((tn, out_f), lambda i: (i, 0)),
        compiler_params=pltpu.CompilerParams(
            # Row tiles are independent -> shard across both v7x TensorCores.
            dimension_semantics=("parallel",),
            # Only needed if row_tile is pushed far beyond the scoped default.
            vmem_limit_bytes=vmem_limit_bytes,
        ),
    )(*operands)

    if n_pad != N:
        out = out[:N]
    return out


def init_params(key, input_features, mlp_hidden_dim, output_features, nmlp_layers=2):
    """Deterministic init mimicking PyTorch nn.Linear default (uniform +/- 1/sqrt(fan_in))."""
    sizes = [input_features] + [mlp_hidden_dim] * nmlp_layers + [output_features]
    params = []
    for fan_in, fan_out in zip(sizes[:-1], sizes[1:]):
        key, kw, kb = jax.random.split(key, 3)
        bound = 1.0 / jnp.sqrt(fan_in)
        w = jax.random.uniform(kw, (fan_in, fan_out), jnp.float32, -bound, bound)
        b = jax.random.uniform(kb, (1, fan_out), jnp.float32, -bound, bound)
        params += [w, b]
    gamma = jnp.ones((1, output_features), jnp.float32)
    beta = jnp.zeros((1, output_features), jnp.float32)
    return tuple(params + [gamma, beta])


def encoder_ref(x, params, eps=1e-5):
    """Plain-JAX reference for correctness checks."""
    n_linear = (len(params) - 2) // 2
    h = x
    for i in range(n_linear):
        w, b = params[2 * i], params[2 * i + 1]
        h = h @ w + b
        if i < n_linear - 1:
            h = jnp.maximum(h, 0.0)
    gamma, beta = params[-2], params[-1]
    mean = h.mean(-1, keepdims=True)
    var = ((h - mean) ** 2).mean(-1, keepdims=True)
    return (h - mean) * lax.rsqrt(var + eps) * gamma + beta


if __name__ == "__main__":
    # Small, module-consistent shapes:
    #   nmlp_layers=2, input_features=16, mlp_hidden_dim=32, output_features=32
    N = 8
    input_features = 16
    mlp_hidden_dim = 32
    output_features = 32
    nmlp_layers = 2

    key = jax.random.PRNGKey(0)
    key, kx = jax.random.split(key)
    x = jax.random.normal(kx, (N, input_features), jnp.float32)
    params = init_params(key, input_features, mlp_hidden_dim, output_features,
                         nmlp_layers)

    ref = encoder_ref(x, params)

    # f32 path: tight tolerance vs. reference.
    out_f32 = jax.block_until_ready(
        encoder_forward(x, params, compute_dtype=jnp.float32))
    assert out_f32.shape == (N, output_features)
    assert jnp.allclose(out_f32, ref, atol=1e-4, rtol=1e-4)

    # bf16-streamed path (halved HBM traffic for x / weights): looser tolerance.
    out_bf16 = jax.block_until_ready(
        encoder_forward(x, params, compute_dtype=jnp.bfloat16))
    assert out_bf16.shape == (N, output_features)
    assert jnp.allclose(out_bf16, ref, atol=1e-1, rtol=1e-1)

    # Ragged-N path (exercises the pad + slice handling with a multi-tile grid).
    N2 = 1000
    key, kx2 = jax.random.split(key)
    x2 = jax.random.normal(kx2, (N2, input_features), jnp.float32)
    out2 = jax.block_until_ready(
        encoder_forward(x2, params, row_tile=256, compute_dtype=jnp.float32))
    assert out2.shape == (N2, output_features)
    assert jnp.allclose(out2, encoder_ref(x2, params), atol=1e-4, rtol=1e-4)

    print("KERNEL_OK")
</pallas_src>

<mosaic_0001>
module attributes {stable_mosaic.version = 11 : i64} {
  func.func @kernel(%arg0: i32, %arg1: memref<8x16xf32, #tpu.memory_space<vmem>>, %arg2: memref<16x32xf32, #tpu.memory_space<vmem>>, %arg3: memref<1x32xf32, #tpu.memory_space<vmem>>, %arg4: memref<32x32xf32, #tpu.memory_space<vmem>>, %arg5: memref<1x32xf32, #tpu.memory_space<vmem>>, %arg6: memref<32x32xf32, #tpu.memory_space<vmem>>, %arg7: memref<1x32xf32, #tpu.memory_space<vmem>>, %arg8: memref<1x32xf32, #tpu.memory_space<vmem>>, %arg9: memref<1x32xf32, #tpu.memory_space<vmem>>, %arg10: memref<8x32xf32, #tpu.memory_space<vmem>>) attributes {dimension_semantics = [#tpu.dimension_semantics<parallel>], iteration_bounds = array<i64: 1>, scalar_prefetch = 0 : i64, scratch_operands = 0 : i64, tpu.core_type = #tpu.core_type<tc>, window_params = [{transform_indices = @transform_0, window_bounds = array<i64: 8, 16>}, {pipeline_mode = #tpu.pipeline_mode<synchronous>, transform_indices = @transform_1, window_bounds = array<i64: 16, 32>}, {pipeline_mode = #tpu.pipeline_mode<synchronous>, transform_indices = @transform_2, window_bounds = array<i64: 1, 32>}, {pipeline_mode = #tpu.pipeline_mode<synchronous>, transform_indices = @transform_3, window_bounds = array<i64: 32, 32>}, {pipeline_mode = #tpu.pipeline_mode<synchronous>, transform_indices = @transform_4, window_bounds = array<i64: 1, 32>}, {pipeline_mode = #tpu.pipeline_mode<synchronous>, transform_indices = @transform_5, window_bounds = array<i64: 32, 32>}, {pipeline_mode = #tpu.pipeline_mode<synchronous>, transform_indices = @transform_6, window_bounds = array<i64: 1, 32>}, {pipeline_mode = #tpu.pipeline_mode<synchronous>, transform_indices = @transform_7, window_bounds = array<i64: 1, 32>}, {pipeline_mode = #tpu.pipeline_mode<synchronous>, transform_indices = @transform_8, window_bounds = array<i64: 1, 32>}, {transform_indices = @transform_9, window_bounds = array<i64: 8, 32>}]} {
    %c0 = arith.constant 0 : index
    %c0_0 = arith.constant 0 : index
    %0 = vector.load %arg1[%c0, %c0_0] : memref<8x16xf32, #tpu.memory_space<vmem>>, vector<8x16xf32>
    %c0_1 = arith.constant 0 : index
    %c0_2 = arith.constant 0 : index
    %1 = vector.load %arg2[%c0_1, %c0_2] : memref<16x32xf32, #tpu.memory_space<vmem>>, vector<16x32xf32>
    %cst = arith.constant dense<0.000000e+00> : vector<8x32xf32>
    %2 = tpu.matmul %0, %1, %cst {dimension_numbers = #tpu.dot_dimension_numbers<[1], [0], [0], [1], [0, 0, 1, 1], [], []>} : vector<8x16xf32>, vector<16x32xf32>, vector<8x32xf32> -> vector<8x32xf32>
    %c0_3 = arith.constant 0 : index
    %c0_4 = arith.constant 0 : index
    %3 = vector.load %arg3[%c0_3, %c0_4] : memref<1x32xf32, #tpu.memory_space<vmem>>, vector<1x32xf32>
    %4 = vector.broadcast %3 : vector<1x32xf32> to vector<8x32xf32>
    %5 = arith.addf %2, %4 : vector<8x32xf32>
    %cst_5 = arith.constant 0.000000e+00 : f32
    %6 = vector.broadcast %cst_5 : f32 to vector<8x32xf32>
    %7 = arith.maximumf %5, %6 : vector<8x32xf32>
    %c0_6 = arith.constant 0 : index
    %c0_7 = arith.constant 0 : index
    %8 = vector.load %arg4[%c0_6, %c0_7] : memref<32x32xf32, #tpu.memory_space<vmem>>, vector<32x32xf32>
    %cst_8 = arith.constant dense<0.000000e+00> : vector<8x32xf32>
    %9 = tpu.matmul %7, %8, %cst_8 {dimension_numbers = #tpu.dot_dimension_numbers<[1], [0], [0], [1], [0, 0, 1, 1], [], []>} : vector<8x32xf32>, vector<32x32xf32>, vector<8x32xf32> -> vector<8x32xf32>
    %c0_9 = arith.constant 0 : index
    %c0_10 = arith.constant 0 : index
    %10 = vector.load %arg5[%c0_9, %c0_10] : memref<1x32xf32, #tpu.memory_space<vmem>>, vector<1x32xf32>
    %11 = vector.broadcast %10 : vector<1x32xf32> to vector<8x32xf32>
    %12 = arith.addf %9, %11 : vector<8x32xf32>
    %cst_11 = arith.constant 0.000000e+00 : f32
    %13 = vector.broadcast %cst_11 : f32 to vector<8x32xf32>
    %14 = arith.maximumf %12, %13 : vector<8x32xf32>
    %c0_12 = arith.constant 0 : index
    %c0_13 = arith.constant 0 : index
    %15 = vector.load %arg6[%c0_12, %c0_13] : memref<32x32xf32, #tpu.memory_space<vmem>>, vector<32x32xf32>
    %cst_14 = arith.constant dense<0.000000e+00> : vector<8x32xf32>
    %16 = tpu.matmul %14, %15, %cst_14 {dimension_numbers = #tpu.dot_dimension_numbers<[1], [0], [0], [1], [0, 0, 1, 1], [], []>} : vector<8x32xf32>, vector<32x32xf32>, vector<8x32xf32> -> vector<8x32xf32>
    %c0_15 = arith.constant 0 : index
    %c0_16 = arith.constant 0 : index
    %17 = vector.load %arg7[%c0_15, %c0_16] : memref<1x32xf32, #tpu.memory_space<vmem>>, vector<1x32xf32>
    %18 = vector.broadcast %17 : vector<1x32xf32> to vector<8x32xf32>
    %19 = arith.addf %16, %18 : vector<8x32xf32>
    %cst_17 = arith.constant dense<0.000000e+00> : vector<8xf32>
    %20 = vector.multi_reduction <add>, %19, %cst_17 [1] : vector<8x32xf32> to vector<8xf32>
    %21 = vector.shape_cast %20 : vector<8xf32> to vector<8x1xf32>
    %cst_18 = arith.constant 3.200000e+01 : f32
    %22 = vector.broadcast %cst_18 : f32 to vector<8x1xf32>
    %23 = arith.divf %21, %22 : vector<8x1xf32>
    %24 = vector.broadcast %23 : vector<8x1xf32> to vector<8x32xf32>
    %25 = arith.subf %19, %24 : vector<8x32xf32>
    %26 = arith.mulf %25, %25 : vector<8x32xf32>
    %cst_19 = arith.constant dense<0.000000e+00> : vector<8xf32>
    %27 = vector.multi_reduction <add>, %26, %cst_19 [1] : vector<8x32xf32> to vector<8xf32>
    %28 = vector.shape_cast %27 : vector<8xf32> to vector<8x1xf32>
    %cst_20 = arith.constant 3.200000e+01 : f32
    %29 = vector.broadcast %cst_20 : f32 to vector<8x1xf32>
    %30 = arith.divf %28, %29 : vector<8x1xf32>
    %cst_21 = arith.constant 9.99999974E-6 : f32
    %31 = vector.broadcast %cst_21 : f32 to vector<8x1xf32>
    %32 = arith.addf %30, %31 : vector<8x1xf32>
    %33 = math.rsqrt %32 : vector<8x1xf32>
    %34 = vector.broadcast %33 : vector<8x1xf32> to vector<8x32xf32>
    %35 = arith.mulf %25, %34 : vector<8x32xf32>
    %c0_22 = arith.constant 0 : index
    %c0_23 = arith.constant 0 : index
    %36 = vector.load %arg8[%c0_22, %c0_23] : memref<1x32xf32, #tpu.memory_space<vmem>>, vector<1x32xf32>
    %37 = vector.broadcast %36 : vector<1x32xf32> to vector<8x32xf32>
    %38 = arith.mulf %35, %37 : vector<8x32xf32>
    %c0_24 = arith.constant 0 : index
    %c0_25 = arith.constant 0 : index
    %39 = vector.load %arg9[%c0_24, %c0_25] : memref<1x32xf32, #tpu.memory_space<vmem>>, vector<1x32xf32>
    %40 = vector.broadcast %39 : vector<1x32xf32> to vector<8x32xf32>
    %41 = arith.addf %38, %40 : vector<8x32xf32>
    %c0_26 = arith.constant 0 : index
    %c0_27 = arith.constant 0 : index
    %42 = vector.load %arg10[%c0_26, %c0_27] : memref<8x32xf32, #tpu.memory_space<vmem>>, vector<8x32xf32>
    tpu.vector_store %arg10[%c0_26, %c0_27], %41 {strides = array<i32>} : memref<8x32xf32, #tpu.memory_space<vmem>>, vector<8x32xf32>,
    return
  }
  func.func @transform_0(%arg0: i32) -> (i32, i32) {
    %c0_i32 = arith.constant 0 : i32
    %c0_i32_0 = arith.constant 0 : i32
    return %arg0, %c0_i32 : i32, i32
  }
  func.func @transform_1(%arg0: i32) -> (i32, i32) {
    %c0_i32 = arith.constant 0 : i32
    %c0_i32_0 = arith.constant 0 : i32
    %c0_i32_1 = arith.constant 0 : i32
    return %c0_i32, %c0_i32_0 : i32, i32
  }
  func.func @transform_2(%arg0: i32) -> (i32, i32) {
    %c0_i32 = arith.constant 0 : i32
    %c0_i32_0 = arith.constant 0 : i32
    %c0_i32_1 = arith.constant 0 : i32
    return %c0_i32, %c0_i32_0 : i32, i32
  }
  func.func @transform_3(%arg0: i32) -> (i32, i32) {
    %c0_i32 = arith.constant 0 : i32
    %c0_i32_0 = arith.constant 0 : i32
    %c0_i32_1 = arith.constant 0 : i32
    return %c0_i32, %c0_i32_0 : i32, i32
  }
  func.func @transform_4(%arg0: i32) -> (i32, i32) {
    %c0_i32 = arith.constant 0 : i32
    %c0_i32_0 = arith.constant 0 : i32
    %c0_i32_1 = arith.constant 0 : i32
    return %c0_i32, %c0_i32_0 : i32, i32
  }
  func.func @transform_5(%arg0: i32) -> (i32, i32) {
    %c0_i32 = arith.constant 0 : i32
    %c0_i32_0 = arith.constant 0 : i32
    %c0_i32_1 = arith.constant 0 : i32
    return %c0_i32, %c0_i32_0 : i32, i32
  }
  func.func @transform_6(%arg0: i32) -> (i32, i32) {
    %c0_i32 = arith.constant 0 : i32
    %c0_i32_0 = arith.constant 0 : i32
    %c0_i32_1 = arith.constant 0 : i32
    return %c0_i32, %c0_i32_0 : i32, i32
  }
  func.func @transform_7(%arg0: i32) -> (i32, i32) {
    %c0_i32 = arith.constant 0 : i32
    %c0_i32_0 = arith.constant 0 : i32
    %c0_i32_1 = arith.constant 0 : i32
    return %c0_i32, %c0_i32_0 : i32, i32
  }
  func.func @transform_8(%arg0: i32) -> (i32, i32) {
    %c0_i32 = arith.constant 0 : i32
    %c0_i32_0 = arith.constant 0 : i32
    %c0_i32_1 = arith.constant 0 : i32
    return %c0_i32, %c0_i32_0 : i32, i32
  }
  func.func @transform_9(%arg0: i32) -> (i32, i32) {
    %c0_i32 = arith.constant 0 : i32
    %c0_i32_0 = arith.constant 0 : i32
    return %arg0, %c0_i32 : i32, i32
  }
}

</mosaic_0001>

<llo_original>
// kernel: tpu_custom_call.1
$region0: #{tpu_custom_call.1}
  #allocation0 [shape = 'u32[]', space=smem, size = 0x4, offset = 0x4, fixed_abs, tag = 'smem constant byte address 0x4 - core index']
  #allocation1 [shape = 'u32[144,128]{1,0:T(1,128)}', space=vmem, size = 0x12000, scoped, tag = 'internal scratch']
  %s0 = inlined_call_operand.hbm [shape: f32[8,16], index: 0, kind: input, shape index: {}]
  %s1 = inlined_call_operand.hbm [shape: f32[16,32], index: 1, kind: input, shape index: {}]
  %s2 = inlined_call_operand.vmem [shape: f32[1,32], index: 2, kind: input, shape index: {}]
  %s3 = inlined_call_operand.hbm [shape: f32[32,32], index: 3, kind: input, shape index: {}]
  %s4 = inlined_call_operand.vmem [shape: f32[1,32], index: 4, kind: input, shape index: {}]
  %s5 = inlined_call_operand.hbm [shape: f32[32,32], index: 5, kind: input, shape index: {}]
  %s6 = inlined_call_operand.vmem [shape: f32[1,32], index: 6, kind: input, shape index: {}]
  %s7 = inlined_call_operand.vmem [shape: f32[1,32], index: 7, kind: input, shape index: {}]
  %s8 = inlined_call_operand.vmem [shape: f32[1,32], index: 8, kind: input, shape index: {}]
  %s9 = inlined_call_operand.hbm [shape: f32[8,32], index: 9, kind: output, shape index: {}]
  %s10 = sld [smem:[#allocation0]]
  $region62: #{tpu_custom_call.1} parent=0
    _
  %s12 = ssub.s32 1, %s10
  %s13 = scalar_select 0, %s12, %s10
  $region1: #{tpu_custom_call.1} parent=0
    #allocation2 [shape = 'u8[4096]{0}', space=vmem, size = 0x1000, scoped, tag = 'input window, operand 0, single buffered']
    #allocation3 [shape = 's32[1]{0}', space=sflag, size = 0x4, scoped, tag = 'scoped memory for tpu_custom_call.1']
    #allocation4 [shape = 's32[1]{0}', space=sflag, size = 0x4, scoped, tag = 'scoped memory for tpu_custom_call.1']
    #allocation5 [shape = 'u8[8192]{0}', space=vmem, size = 0x2000, scoped, tag = 'input window, operand 1, single buffered']
    #allocation6 [shape = 's32[1]{0}', space=sflag, size = 0x4, scoped, tag = 'scoped memory for tpu_custom_call.1']
    #allocation7 [shape = 'u8[16384]{0}', space=vmem, size = 0x4000, scoped, tag = 'input window, operand 3, single buffered']
    #allocation8 [shape = 'u8[16384]{0}', space=vmem, size = 0x4000, scoped, tag = 'input window, operand 5, single buffered']
    #allocation9 [shape = 's32[1]{0}', space=sflag, size = 0x4, scoped, tag = 'scoped memory for tpu_custom_call.1']
    #allocation10 [shape = 'u8[4096]{0}', space=vmem, size = 0x1000, scoped, tag = 'output window, operand 0, single buffered']
    %14 = vsyncpa [#allocation3], 0
    %15 = vsyncpa [#allocation6], 0
    %16 = vsyncpa [#allocation9], 0
    %17 = vsyncpa [#allocation4], 0
    // Predicated region
    $region2: #{tpu_custom_call.1} parent=1 // pred_check
      _
    $region3: #{tpu_custom_call.1} parent=1 // pred_check_branch
      %19 = sbr.rel (0) target = $region5
    $region4: #{tpu_custom_call.1} parent=1 // pred_region
      %s21 = ssub.s32 128, 128
      %22 = vsyncadd [#allocation3], %s21
      %s24 = sshll.u32 [#allocation2], 4
      %s25 = int_to_ptr.vmem [resolvable:$true] %s24
      %27 = dma.hbm_to_vmem [thread:$0]  %s0, 128, %s25, [#allocation3]
    $region5: #{tpu_custom_call.1} parent=1 // pred_fallthru
      _
    // Predicated region
    $region6: #{tpu_custom_call.1} parent=1 // pred_check
      _
    $region7: #{tpu_custom_call.1} parent=1 // pred_check_branch
      %29 = sbr.rel (0) target = $region9
    $region8: #{tpu_custom_call.1} parent=1 // pred_region
      %s31 = ssub.s32 256, 256
      %32 = vsyncadd [#allocation6], %s31
      %s33 = sshll.u32 [#allocation5], 4
      %s34 = int_to_ptr.vmem [resolvable:$true] %s33
      %39 = dma.hbm_to_vmem [thread:$0]  %s1, 256, %s34, [#allocation6], 128, 128, 8
    $region9: #{tpu_custom_call.1} parent=1 // pred_fallthru
      _
    // Predicated region
    $region10: #{tpu_custom_call.1} parent=1 // pred_check
      _
    $region11: #{tpu_custom_call.1} parent=1 // pred_check_branch
      %41 = sbr.rel (0) target = $region13
    $region12: #{tpu_custom_call.1} parent=1 // pred_region
      _
    $region13: #{tpu_custom_call.1} parent=1 // pred_fallthru
      _
    // Predicated region
    $region14: #{tpu_custom_call.1} parent=1 // pred_check
      _
    $region15: #{tpu_custom_call.1} parent=1 // pred_check_branch
      %43 = sbr.rel (0) target = $region17
    $region16: #{tpu_custom_call.1} parent=1 // pred_region
      %s45 = ssub.s32 512, 512
      %46 = vsyncadd [#allocation6], %s45
      %s47 = sshll.u32 [#allocation7], 4
      %s48 = int_to_ptr.vmem [resolvable:$true] %s47
      %53 = dma.hbm_to_vmem [thread:$0]  %s3, 512, %s48, [#allocation6], 128, 128, 8
    $region17: #{tpu_custom_call.1} parent=1 // pred_fallthru
      _
    // Predicated region
    $region18: #{tpu_custom_call.1} parent=1 // pred_check
      _
    $region19: #{tpu_custom_call.1} parent=1 // pred_check_branch
      %55 = sbr.rel (0) target = $region21
    $region20: #{tpu_custom_call.1} parent=1 // pred_region
      _
    $region21: #{tpu_custom_call.1} parent=1 // pred_fallthru
      _
    // Predicated region
    $region22: #{tpu_custom_call.1} parent=1 // pred_check
      _
    $region23: #{tpu_custom_call.1} parent=1 // pred_check_branch
      %57 = sbr.rel (0) target = $region25
    $region24: #{tpu_custom_call.1} parent=1 // pred_region
      %s59 = ssub.s32 512, 512
      %60 = vsyncadd [#allocation9], %s59
      %s61 = sshll.u32 [#allocation8], 4
      %s62 = int_to_ptr.vmem [resolvable:$true] %s61
      %67 = dma.hbm_to_vmem [thread:$0]  %s5, 512, %s62, [#allocation9], 128, 128, 8
    $region25: #{tpu_custom_call.1} parent=1 // pred_fallthru
      _
    // Predicated region
    $region26: #{tpu_custom_call.1} parent=1 // pred_check
      _
    $region27: #{tpu_custom_call.1} parent=1 // pred_check_branch
      %69 = sbr.rel (0) target = $region29
    $region28: #{tpu_custom_call.1} parent=1 // pred_region
      _
    $region29: #{tpu_custom_call.1} parent=1 // pred_fallthru
      _
    // Predicated region
    $region30: #{tpu_custom_call.1} parent=1 // pred_check
      _
    $region31: #{tpu_custom_call.1} parent=1 // pred_check_branch
      %71 = sbr.rel (0) target = $region33
    $region32: #{tpu_custom_call.1} parent=1 // pred_region
      _
    $region33: #{tpu_custom_call.1} parent=1 // pred_fallthru
      _
    // Predicated region
    $region34: #{tpu_custom_call.1} parent=1 // pred_check
      _
    $region35: #{tpu_custom_call.1} parent=1 // pred_check_branch
      %73 = sbr.rel (0) target = $region37
    $region36: #{tpu_custom_call.1} parent=1 // pred_region
      _
    $region37: #{tpu_custom_call.1} parent=1 // pred_fallthru
      _
    // Predicated region
    $region38: #{tpu_custom_call.1} parent=1 // pred_check
      _
    $region39: #{tpu_custom_call.1} parent=1 // pred_check_branch
      %75 = sbr.rel (0) target = $region41
    $region40: #{tpu_custom_call.1} parent=1 // pred_region
      %76 = dma.done [#allocation3], 128
    $region41: #{tpu_custom_call.1} parent=1 // pred_fallthru
      _
    // Predicated region
    $region42: #{tpu_custom_call.1} parent=1 // pred_check
      _
    $region43: #{tpu_custom_call.1} parent=1 // pred_check_branch
      %78 = sbr.rel (0) target = $region45
    $region44: #{tpu_custom_call.1} parent=1 // pred_region
      %79 = dma.done [#allocation6], 256
    $region45: #{tpu_custom_call.1} parent=1 // pred_fallthru
      _
    // Predicated region
    $region46: #{tpu_custom_call.1} parent=1 // pred_check
      _
    $region47: #{tpu_custom_call.1} parent=1 // pred_check_branch
      %81 = sbr.rel (0) target = $region49
    $region48: #{tpu_custom_call.1} parent=1 // pred_region
      %82 = dma.done [#allocation6], 512
    $region49: #{tpu_custom_call.1} parent=1 // pred_fallthru
      _
    // Predicated region
    $region50: #{tpu_custom_call.1} parent=1 // pred_check
      _
    $region51: #{tpu_custom_call.1} parent=1 // pred_check_branch
      %84 = sbr.rel (0) target = $region53
    $region52: #{tpu_custom_call.1} parent=1 // pred_region
      %85 = dma.done [#allocation9], 512
    $region53: #{tpu_custom_call.1} parent=1 // pred_fallthru
      _
    %v86 = vld [vmem:[#allocation2] sm:$0xff]
    %v87 = vld [vmem:[#allocation5] sm:$0xff]
    %v88 = vld [vmem:[#allocation5 + $0x8] sm:$0xff]
    %v89 = vld [vmem:[%s2] sm:$0x1]
    %v91 = vlaneseq
    %v92 = vshrl.u32 %v91, 7
    %v93 = vsub.s32 0, %v92
    %v94 = vrot.slane %v89, %v93
    %vm96 = vcmask 130048
    %v98 = vsel %vm96, %v86, 0
    %100 = vmatprep.subr.mxu0 0.0
    %101 = vmatpush1.msra.mxu0 0.0
    %102 = vmatprep.subr.mxu0 0.0
    %103 = vmatpush1.msra.mxu0 0.0
    %104 = vmatprep.subr.mxu0 0.0
    %105 = vmatpush1.msra.mxu0 0.0
    %106 = vmatprep.subr.mxu0 0.0
    %107 = vmatpush1.msra.mxu0 0.0
    %108 = vmatprep.subr.mxu0 0.0
    %109 = vmatpush1.msra.mxu0 0.0
    %110 = vmatprep.subr.mxu0 0.0
    %111 = vmatpush1.msra.mxu0 0.0
    %112 = vmatprep.subr.mxu0 0.0
    %113 = vmatpush1.msra.mxu0 0.0
    %114 = vmatprep.subr.mxu0 0.0
    %115 = vmatpush1.msra.mxu0 0.0
    %116 = vmatprep.subr.mxu0 0.0
    %117 = vmatpush1.msra.mxu0 0.0
    %118 = vmatprep.subr.mxu0 0.0
    %119 = vmatpush1.msra.mxu0 0.0
    %120 = vmatprep.subr.mxu0 0.0
    %121 = vmatpush1.msra.mxu0 0.0
    %122 = vmatprep.subr.mxu0 0.0
    %123 = vmatpush1.msra.mxu0 0.0
    %124 = vmatprep.subr.mxu0 0.0
    %125 = vmatpush1.msra.mxu0 0.0
    %126 = vmatprep.subr.mxu0 0.0
    %127 = vmatpush1.msra.mxu0 0.0
    %128 = vmatprep.subr.mxu0 0.0
    %129 = vmatpush1.msra.mxu0 %v88
    %130 = vmatprep.subr.mxu0 0.0
    %131 = vmatpush1.msra.mxu0 %v87
    %132 = vmatprep.subr.mxu0 0.0
    %133 = vmatpush2.msra.mxu0 0.0
    %134 = vmatprep.subr.mxu0 0.0
    %135 = vmatpush2.msra.mxu0 0.0
    %136 = vmatprep.subr.mxu0 0.0
    %137 = vmatpush2.msra.mxu0 0.0
    %138 = vmatprep.subr.mxu0 0.0
    %139 = vmatpush2.msra.mxu0 0.0
    %140 = vmatprep.subr.mxu0 0.0
    %141 = vmatpush2.msra.mxu0 0.0
    %142 = vmatprep.subr.mxu0 0.0
    %143 = vmatpush2.msra.mxu0 0.0
    %144 = vmatprep.subr.mxu0 0.0
    %145 = vmatpush2.msra.mxu0 0.0
    %146 = vmatprep.subr.mxu0 0.0
    %147 = vmatpush2.msra.mxu0 0.0
    %148 = vmatprep.subr.mxu0 0.0
    %149 = vmatpush2.msra.mxu0 0.0
    %150 = vmatprep.subr.mxu0 0.0
    %151 = vmatpush2.msra.mxu0 0.0
    %152 = vmatprep.subr.mxu0 0.0
    %153 = vmatpush2.msra.mxu0 0.0
    %154 = vmatprep.subr.mxu0 0.0
    %155 = vmatpush2.msra.mxu0 0.0
    %156 = vmatprep.subr.mxu0 0.0
    %157 = vmatpush2.msra.mxu0 0.0
    %158 = vmatprep.subr.mxu0 0.0
    %159 = vmatpush2.msra.mxu0 0.0
    %160 = vmatprep.subr.mxu0 0.0
    %161 = vmatpush2.msra.mxu0 0.0
    %162 = vmatprep.subr.mxu0 0.0
    %163 = vmatpush2.msra.mxu0 0.0
    %164 = vmatprep.mubr.f32.mxu0 0.0
    %165 = vmatmul.mubr.f32.gmra.mxu0 %v98
    %v166 = vpop.f32.mrf.mxu0
    %v167 = vadd.f32 %v94, %v166
    %v168 = vpop.f32.mrf.mxu0
    %169 = vdwg.mxu0
    %v170 = vmax.f32 %v167, 0.0
    %v171 = vld [vmem:[#allocation7] sm:$0xff]
    %v172 = vld [vmem:[#allocation7 + $0x8] sm:$0xff]
    %v173 = vld [vmem:[#allocation7 + $0x10] sm:$0xff]
    %v174 = vld [vmem:[#allocation7 + $0x18] sm:$0xff]
    %v175 = vld [vmem:[%s4] sm:$0x1]
    %v177 = vlaneseq
    %v178 = vshrl.u32 %v177, 7
    %v179 = vsub.s32 0, %v178
    %v180 = vrot.slane %v175, %v179
    %vm182 = vcmask 261120
    %v184 = vsel %vm182, %v170, 0
    %186 = vmatprep.subr.mxu0 0.0
    %187 = vmatpush1.msra.mxu0 0.0
    %188 = vmatprep.subr.mxu0 0.0
    %189 = vmatpush1.msra.mxu0 0.0
    %190 = vmatprep.subr.mxu0 0.0
    %191 = vmatpush1.msra.mxu0 0.0
    %192 = vmatprep.subr.mxu0 0.0
    %193 = vmatpush1.msra.mxu0 0.0
    %194 = vmatprep.subr.mxu0 0.0
    %195 = vmatpush1.msra.mxu0 0.0
    %196 = vmatprep.subr.mxu0 0.0
    %197 = vmatpush1.msra.mxu0 0.0
    %198 = vmatprep.subr.mxu0 0.0
    %199 = vmatpush1.msra.mxu0 0.0
    %200 = vmatprep.subr.mxu0 0.0
    %201 = vmatpush1.msra.mxu0 0.0
    %202 = vmatprep.subr.mxu0 0.0
    %203 = vmatpush1.msra.mxu0 0.0
    %204 = vmatprep.subr.mxu0 0.0
    %205 = vmatpush1.msra.mxu0 0.0
    %206 = vmatprep.subr.mxu0 0.0
    %207 = vmatpush1.msra.mxu0 0.0
    %208 = vmatprep.subr.mxu0 0.0
    %209 = vmatpush1.msra.mxu0 0.0
    %210 = vmatprep.subr.mxu0 0.0
    %211 = vmatpush1.msra.mxu0 %v174
    %212 = vmatprep.subr.mxu0 0.0
    %213 = vmatpush1.msra.mxu0 %v173
    %214 = vmatprep.subr.mxu0 0.0
    %215 = vmatpush1.msra.mxu0 %v172
    %216 = vmatprep.subr.mxu0 0.0
    %217 = vmatpush1.msra.mxu0 %v171
    %218 = vmatprep.subr.mxu0 0.0
    %219 = vmatpush2.msra.mxu0 0.0
    %220 = vmatprep.subr.mxu0 0.0
    %221 = vmatpush2.msra.mxu0 0.0
    %222 = vmatprep.subr.mxu0 0.0
    %223 = vmatpush2.msra.mxu0 0.0
    %224 = vmatprep.subr.mxu0 0.0
    %225 = vmatpush2.msra.mxu0 0.0
    %226 = vmatprep.subr.mxu0 0.0
    %227 = vmatpush2.msra.mxu0 0.0
    %228 = vmatprep.subr.mxu0 0.0
    %229 = vmatpush2.msra.mxu0 0.0
    %230 = vmatprep.subr.mxu0 0.0
    %231 = vmatpush2.msra.mxu0 0.0
    %232 = vmatprep.subr.mxu0 0.0
    %233 = vmatpush2.msra.mxu0 0.0
    %234 = vmatprep.subr.mxu0 0.0
    %235 = vmatpush2.msra.mxu0 0.0
    %236 = vmatprep.subr.mxu0 0.0
    %237 = vmatpush2.msra.mxu0 0.0
    %238 = vmatprep.subr.mxu0 0.0
    %239 = vmatpush2.msra.mxu0 0.0
    %240 = vmatprep.subr.mxu0 0.0
    %241 = vmatpush2.msra.mxu0 0.0
    %242 = vmatprep.subr.mxu0 0.0
    %243 = vmatpush2.msra.mxu0 0.0
    %244 = vmatprep.subr.mxu0 0.0
    %245 = vmatpush2.msra.mxu0 0.0
    %246 = vmatprep.subr.mxu0 0.0
    %247 = vmatpush2.msra.mxu0 0.0
    %248 = vmatprep.subr.mxu0 0.0
    %249 = vmatpush2.msra.mxu0 0.0
    %250 = vmatprep.mubr.f32.mxu0 0.0
    %251 = vmatmul.mubr.f32.gmra.mxu0 %v184
    %v252 = vpop.f32.mrf.mxu0
    %v253 = vadd.f32 %v180, %v252
    %v254 = vpop.f32.mrf.mxu0
    %255 = vdwg.mxu0
    %v256 = vmax.f32 %v253, 0.0
    %v257 = vld [vmem:[#allocation8] sm:$0xff]
    %v258 = vld [vmem:[#allocation8 + $0x8] sm:$0xff]
    %v259 = vld [vmem:[#allocation8 + $0x10] sm:$0xff]
    %v260 = vld [vmem:[#allocation8 + $0x18] sm:$0xff]
    %v261 = vld [vmem:[%s6] sm:$0x1]
    %v263 = vlaneseq
    %v264 = vshrl.u32 %v263, 7
    %v265 = vsub.s32 0, %v264
    %v266 = vrot.slane %v261, %v265
    %v269 = vsel %vm182, %v256, 0
    %271 = vmatprep.subr.mxu0 0.0
    %272 = vmatpush1.msra.mxu0 0.0
    %273 = vmatprep.subr.mxu0 0.0
    %274 = vmatpush1.msra.mxu0 0.0
    %275 = vmatprep.subr.mxu0 0.0
    %276 = vmatpush1.msra.mxu0 0.0
    %277 = vmatprep.subr.mxu0 0.0
    %278 = vmatpush1.msra.mxu0 0.0
    %279 = vmatprep.subr.mxu0 0.0
    %280 = vmatpush1.msra.mxu0 0.0
    %281 = vmatprep.subr.mxu0 0.0
    %282 = vmatpush1.msra.mxu0 0.0
    %283 = vmatprep.subr.mxu0 0.0
    %284 = vmatpush1.msra.mxu0 0.0
    %285 = vmatprep.subr.mxu0 0.0
    %286 = vmatpush1.msra.mxu0 0.0
    %287 = vmatprep.subr.mxu0 0.0
    %288 = vmatpush1.msra.mxu0 0.0
    %289 = vmatprep.subr.mxu0 0.0
    %290 = vmatpush1.msra.mxu0 0.0
    %291 = vmatprep.subr.mxu0 0.0
    %292 = vmatpush1.msra.mxu0 0.0
    %293 = vmatprep.subr.mxu0 0.0
    %294 = vmatpush1.msra.mxu0 0.0
    %295 = vmatprep.subr.mxu0 0.0
    %296 = vmatpush1.msra.mxu0 %v260
    %297 = vmatprep.subr.mxu0 0.0
    %298 = vmatpush1.msra.mxu0 %v259
    %299 = vmatprep.subr.mxu0 0.0
    %300 = vmatpush1.msra.mxu0 %v258
    %301 = vmatprep.subr.mxu0 0.0
    %302 = vmatpush1.msra.mxu0 %v257
    %303 = vmatprep.subr.mxu0 0.0
    %304 = vmatpush2.msra.mxu0 0.0
    %305 = vmatprep.subr.mxu0 0.0
    %306 = vmatpush2.msra.mxu0 0.0
    %307 = vmatprep.subr.mxu0 0.0
    %308 = vmatpush2.msra.mxu0 0.0
    %309 = vmatprep.subr.mxu0 0.0
    %310 = vmatpush2.msra.mxu0 0.0
    %311 = vmatprep.subr.mxu0 0.0
    %312 = vmatpush2.msra.mxu0 0.0
    %313 = vmatprep.subr.mxu0 0.0
    %314 = vmatpush2.msra.mxu0 0.0
    %315 = vmatprep.subr.mxu0 0.0
    %316 = vmatpush2.msra.mxu0 0.0
    %317 = vmatprep.subr.mxu0 0.0
    %318 = vmatpush2.msra.mxu0 0.0
    %319 = vmatprep.subr.mxu0 0.0
    %320 = vmatpush2.msra.mxu0 0.0
    %321 = vmatprep.subr.mxu0 0.0
    %322 = vmatpush2.msra.mxu0 0.0
    %323 = vmatprep.subr.mxu0 0.0
    %324 = vmatpush2.msra.mxu0 0.0
    %325 = vmatprep.subr.mxu0 0.0
    %326 = vmatpush2.msra.mxu0 0.0
    %327 = vmatprep.subr.mxu0 0.0
    %328 = vmatpush2.msra.mxu0 0.0
    %329 = vmatprep.subr.mxu0 0.0
    %330 = vmatpush2.msra.mxu0 0.0
    %331 = vmatprep.subr.mxu0 0.0
    %332 = vmatpush2.msra.mxu0 0.0
    %333 = vmatprep.subr.mxu0 0.0
    %334 = vmatpush2.msra.mxu0 0.0
    %335 = vmatprep.mubr.f32.mxu0 0.0
    %336 = vmatmul.mubr.f32.gmra.mxu0 %v269
    %v337 = vpop.f32.mrf.mxu0
    %v338 = vadd.f32 %v266, %v337
    %v339 = vpop.f32.mrf.mxu0
    %340 = vdwg.mxu0
    %v341 = vsel %vm182, %v338, 0.0
    %342 = vadd.xlane.f32.xlu0 %v341
    %v343 = vpop.xlane.xlu0 %342
    %v344 = vrcp.pop 32.0
    %v345 = vmul.f32 %v343, %v344
    %v346 = vsub.f32 %v338, %v345
    %v347 = vmul.f32 %v346, %v346
    %v348 = vsel %vm182, %v347, 0.0
    %349 = vadd.xlane.f32.xlu0 %v348
    %v350 = vpop.xlane.xlu0 %349
    %v351 = vmul.f32 %v350, %v344
    %v352 = vadd.f32 %v351, 1e-05
    %v353 = vrsqrt.pop %v352
    %v354 = vmul.f32 %v346, %v353
    %v355 = vld [vmem:[%s7] sm:$0x1]
    %v357 = vlaneseq
    %v358 = vshrl.u32 %v357, 7
    %v359 = vsub.s32 0, %v358
    %v360 = vrot.slane %v355, %v359
    %v362 = vmul.f32 %v354, %v360
    %v363 = vld [vmem:[%s8] sm:$0x1]
    %v365 = vlaneseq
    %v366 = vshrl.u32 %v365, 7
    %v367 = vsub.s32 0, %v366
    %v368 = vrot.slane %v363, %v367
    %v370 = vadd.f32 %v362, %v368
    %371 = vst.msk [vmem:[#allocation10] sm:$0xff] %vm182, %v370
    // Predicated region
    $region54: #{tpu_custom_call.1} parent=1 // pred_check
      _
    $region55: #{tpu_custom_call.1} parent=1 // pred_check_branch
      %373 = sbr.rel (0) target = $region57
    $region56: #{tpu_custom_call.1} parent=1 // pred_region
      %s375 = ssub.s32 128, 128
      %376 = vsyncadd [#allocation4], %s375
      %s378 = sshll.u32 [#allocation10], 4
      %s379 = int_to_ptr.vmem [resolvable:$true] %s378
      %381 = dma.vmem_to_hbm [thread:$0]  %s379, 128, %s9, [#allocation4]
    $region57: #{tpu_custom_call.1} parent=1 // pred_fallthru
      _
    // Predicated region
    $region58: #{tpu_custom_call.1} parent=1 // pred_check
      _
    $region59: #{tpu_custom_call.1} parent=1 // pred_check_branch
      %383 = sbr.rel (0) target = $region61
    $region60: #{tpu_custom_call.1} parent=1 // pred_region
      %384 = dma.done [#allocation4], 128
    $region61: #{tpu_custom_call.1} parent=1 // pred_fallthru
      _
    %385 = vsyncpa [#allocation3], 1
    %386 = vsyncpa [#allocation6], 1
    %387 = vsyncpa [#allocation9], 1
    %388 = vsyncpa [#allocation4], 1

</llo_original>
